<compile_context>
chip_gen: v7x
topology: tpu7x:2x2x1
jax: 0.10.0
libtpu: 0.0.40
codegen_flags: <defaults>
</compile_context>

<pallas_src>
import jax
import jax.numpy as jnp
from jax.experimental import pallas as pl
from jax.experimental.pallas import tpu as pltpu


def _flex_diffuse_kernel(w_ref, x_ref, o_ref):
    # w_ref: (TR, 1) per-row scale  OR  (1, TC) per-column scale (out dtype)
    # x_ref: (TR, TC) input tile
    # o_ref: (TR, TC) output tile
    # jnp broadcasting handles both scale layouts (lane- or sublane-broadcast).
    o_ref[...] = x_ref[...].astype(o_ref.dtype) * w_ref[...]


def make_flex_diffuse_weights(L: int) -> jnp.ndarray:
    """weights[0, i] = (i + 1) / L, float16, shape (1, L) — matches __init__."""
    return ((jnp.arange(L, dtype=jnp.float32) + 1.0) / L).astype(jnp.float16).reshape(1, L)


def _choose_block(n_rows: int, n_cols: int, itemsize: int,
                  target_bytes: int = 2 << 20):
    """Pick a (TR, TC) tile: lane-dense, ~target_bytes, (8,128)-rule compliant."""
    target_elems = max(1, target_bytes // itemsize)
    # Lane (last) dim: full extent when required (not 128-divisible) or when it
    # already fits the budget at 8 rows; otherwise a 128-multiple slice.
    if n_cols % 128 != 0 or n_cols <= target_elems // 8:
        tc = n_cols
    else:
        tc = max(128, min(n_cols, (target_elems // 8) // 128 * 128))
    # Sublane (second-to-last) dim: multiple of 8 or the full row extent.
    rows_budget = max(1, target_elems // tc)
    if rows_budget >= n_rows or n_rows <= 8:
        tr = n_rows
    else:
        tr = max(8, (rows_budget // 8) * 8)
    return tr, tc


def linear_flex_diffuse(x: jnp.ndarray, weights: jnp.ndarray,
                        *, donate_x: bool = False) -> jnp.ndarray:
    """x: (B, L, D), weights: (1, L) float16 -> (B, L, D) in promoted dtype."""
    B, L, D = x.shape
    assert weights.shape == (1, L)

    out_dtype = jnp.promote_types(x.dtype, weights.dtype)   # torch-style promotion
    itemsize = jnp.dtype(out_dtype).itemsize
    flat = L * D

    # COL layout only as a lane-density rescue when D is tiny; otherwise the
    # ROW layout wins (full sublanes, negligible scale traffic).
    use_col = (D < 128) and (flat % 128 == 0)

    if use_col:
        R, C = B, flat
        x2d = x.reshape(R, C)
        # one scale per flattened (L*D) column: each w[i] repeated D times
        w2d = jnp.repeat(weights.astype(out_dtype), D, axis=1)            # (1, L*D)
        TR, TC = _choose_block(R, C, itemsize)
        w_spec = pl.BlockSpec((1, TC), lambda r, c: (0, c))
    else:
        R, C = B * L, D
        x2d = x.reshape(R, C)
        # one scale per row of the (B*L, D) view: weights tiled over batch
        w2d = jnp.tile(weights.astype(out_dtype).reshape(L, 1), (B, 1))   # (B*L, 1)
        TR, TC = _choose_block(R, C, itemsize)
        w_spec = pl.BlockSpec((TR, 1), lambda r, c: (r, 0))

    grid = (pl.cdiv(R, TR), pl.cdiv(C, TC))   # columns innermost -> contiguous HBM streaming

    io_aliases = {}
    if donate_x and x.dtype == out_dtype:
        io_aliases = {1: 0}   # reuse x's buffer for the output (caller must donate x)

    out2d = pl.pallas_call(
        _flex_diffuse_kernel,
        out_shape=jax.ShapeDtypeStruct((R, C), out_dtype),
        grid_spec=pltpu.PrefetchScalarGridSpec(
            num_scalar_prefetch=0,
            grid=grid,
            in_specs=[
                w_spec,                                         # tiny scale block
                pl.BlockSpec((TR, TC), lambda r, c: (r, c)),    # x tile
            ],
            out_specs=pl.BlockSpec((TR, TC), lambda r, c: (r, c)),
        ),
        compiler_params=pltpu.CompilerParams(
            dimension_semantics=("parallel", "parallel"),       # shards across v7x's 2 TCs
        ),
        input_output_aliases=io_aliases,
    )(w2d, x2d)

    return out2d.reshape(B, L, D)


if __name__ == "__main__":
    key = jax.random.PRNGKey(0)
    k1, k2 = jax.random.split(key)

    # Case 1: small D (=32) -> COL layout (lane dim L*D=256, lane-dense stores).
    B, L, D = 2, 8, 32
    x = jax.random.normal(k1, (B, L, D), dtype=jnp.float32)
    weights = make_flex_diffuse_weights(L)
    out = jax.block_until_ready(linear_flex_diffuse(x, weights))
    ref = weights.astype(jnp.float32).T * x     # mirrors torch broadcast semantics
    assert out.shape == ref.shape and out.dtype == ref.dtype
    assert jnp.allclose(out, ref, atol=1e-6, rtol=1e-6), "COL-path mismatch vs reference"

    # Case 2: 128-aligned D -> ROW layout ((B*L, D) view, per-row scale).
    B2, L2, D2 = 2, 8, 128
    x2 = jax.random.normal(k2, (B2, L2, D2), dtype=jnp.float32)
    w2 = make_flex_diffuse_weights(L2)
    out2 = jax.block_until_ready(linear_flex_diffuse(x2, w2))
    ref2 = w2.astype(jnp.float32).T * x2
    assert out2.shape == ref2.shape and out2.dtype == ref2.dtype
    assert jnp.allclose(out2, ref2, atol=1e-6, rtol=1e-6), "ROW-path mismatch vs reference"

    print("KERNEL_OK")
</pallas_src>

<mosaic_0001>
module attributes {stable_mosaic.version = 11 : i64} {
  func.func @_flex_diffuse_kernel(%arg0: i32, %arg1: i32, %arg2: memref<1x256xf32, #tpu.memory_space<vmem>>, %arg3: memref<2x256xf32, #tpu.memory_space<vmem>>, %arg4: memref<2x256xf32, #tpu.memory_space<vmem>>) attributes {dimension_semantics = [#tpu.dimension_semantics<parallel>, #tpu.dimension_semantics<parallel>], iteration_bounds = array<i64: 1, 1>, scalar_prefetch = 0 : i64, scratch_operands = 0 : i64, tpu.core_type = #tpu.core_type<tc>, window_params = [{transform_indices = @transform_0, window_bounds = array<i64: 1, 256>}, {transform_indices = @transform_1, window_bounds = array<i64: 2, 256>}, {transform_indices = @transform_2, window_bounds = array<i64: 2, 256>}]} {
    %c0 = arith.constant 0 : index
    %c0_0 = arith.constant 0 : index
    %0 = vector.load %arg3[%c0, %c0_0] : memref<2x256xf32, #tpu.memory_space<vmem>>, vector<2x256xf32>
    %c0_1 = arith.constant 0 : index
    %c0_2 = arith.constant 0 : index
    %1 = vector.load %arg2[%c0_1, %c0_2] : memref<1x256xf32, #tpu.memory_space<vmem>>, vector<1x256xf32>
    %2 = vector.broadcast %1 : vector<1x256xf32> to vector<2x256xf32>
    %3 = arith.mulf %0, %2 : vector<2x256xf32>
    %c0_3 = arith.constant 0 : index
    %c0_4 = arith.constant 0 : index
    %4 = vector.load %arg4[%c0_3, %c0_4] : memref<2x256xf32, #tpu.memory_space<vmem>>, vector<2x256xf32>
    tpu.vector_store %arg4[%c0_3, %c0_4], %3 {strides = array<i32>} : memref<2x256xf32, #tpu.memory_space<vmem>>, vector<2x256xf32>,
    return
  }
  func.func @transform_0(%arg0: i32, %arg1: i32) -> (i32, i32) {
    %c0_i32 = arith.constant 0 : i32
    %c0_i32_0 = arith.constant 0 : i32
    return %c0_i32, %arg1 : i32, i32
  }
  func.func @transform_1(%arg0: i32, %arg1: i32) -> (i32, i32) {
    %c0_i32 = arith.constant 0 : i32
    return %arg0, %arg1 : i32, i32
  }
  func.func @transform_2(%arg0: i32, %arg1: i32) -> (i32, i32) {
    %c0_i32 = arith.constant 0 : i32
    return %arg0, %arg1 : i32, i32
  }
}

</mosaic_0001>

<llo_original>
// kernel: tpu_custom_call.1
$region0: #{tpu_custom_call.1}
  #allocation0 [shape = 'u32[]', space=smem, size = 0x4, offset = 0x4, fixed_abs, tag = 'smem constant byte address 0x4 - core index']
  #allocation1 [shape = 'u32[144,128]{1,0:T(1,128)}', space=vmem, size = 0x12000, scoped, tag = 'internal scratch']
  %s0 = inlined_call_operand.hbm [shape: f32[1,256], index: 0, kind: input, shape index: {}]
  %s1 = inlined_call_operand.hbm [shape: f32[2,256], index: 1, kind: input, shape index: {}]
  %s2 = inlined_call_operand.hbm [shape: f32[2,256], index: 2, kind: output, shape index: {}]
  %s3 = sld [smem:[#allocation0]]
  $region26: #{tpu_custom_call.1} parent=0
    _
  %s5 = ssub.s32 1, %s3
  %s6 = scalar_select 0, %s5, %s3
  $region1: #{tpu_custom_call.1} parent=0
    #allocation2 [shape = 'u8[1024]{0}', space=vmem, size = 0x400, scoped, tag = 'input window, operand 0, single buffered']
    #allocation3 [shape = 's32[1]{0}', space=sflag, size = 0x4, scoped, tag = 'scoped memory for tpu_custom_call.1']
    #allocation4 [shape = 's32[1]{0}', space=sflag, size = 0x4, scoped, tag = 'scoped memory for tpu_custom_call.1']
    #allocation5 [shape = 'u8[2048]{0}', space=vmem, size = 0x800, scoped, tag = 'input window, operand 1, single buffered']
    #allocation6 [shape = 's32[1]{0}', space=sflag, size = 0x4, scoped, tag = 'scoped memory for tpu_custom_call.1']
    #allocation7 [shape = 'u8[2048]{0}', space=vmem, size = 0x800, scoped, tag = 'output window, operand 0, single buffered']
    %7 = vsyncpa [#allocation3], 0
    %8 = vsyncpa [#allocation6], 0
    %9 = vsyncpa [#allocation4], 0
    // Predicated region
    $region2: #{tpu_custom_call.1} parent=1 // pred_check
      _
    $region3: #{tpu_custom_call.1} parent=1 // pred_check_branch
      %11 = sbr.rel (0) target = $region5
    $region4: #{tpu_custom_call.1} parent=1 // pred_region
      %s13 = ssub.s32 32, 32
      %14 = vsyncadd [#allocation3], %s13
      %s16 = sshll.u32 [#allocation2], 4
      %s17 = int_to_ptr.vmem [resolvable:$true] %s16
      %19 = dma.hbm_to_vmem [thread:$0]  %s0, 32, %s17, [#allocation3]
    $region5: #{tpu_custom_call.1} parent=1 // pred_fallthru
      _
    // Predicated region
    $region6: #{tpu_custom_call.1} parent=1 // pred_check
      _
    $region7: #{tpu_custom_call.1} parent=1 // pred_check_branch
      %21 = sbr.rel (0) target = $region9
    $region8: #{tpu_custom_call.1} parent=1 // pred_region
      %s23 = ssub.s32 64, 64
      %24 = vsyncadd [#allocation6], %s23
      %s26 = sshll.u32 [#allocation5], 4
      %s27 = int_to_ptr.vmem [resolvable:$true] %s26
      %29 = dma.hbm_to_vmem [thread:$0]  %s1, 64, %s27, [#allocation6]
    $region9: #{tpu_custom_call.1} parent=1 // pred_fallthru
      _
    // Predicated region
    $region10: #{tpu_custom_call.1} parent=1 // pred_check
      _
    $region11: #{tpu_custom_call.1} parent=1 // pred_check_branch
      %31 = sbr.rel (0) target = $region13
    $region12: #{tpu_custom_call.1} parent=1 // pred_region
      %32 = dma.done [#allocation3], 32
    $region13: #{tpu_custom_call.1} parent=1 // pred_fallthru
      _
    // Predicated region
    $region14: #{tpu_custom_call.1} parent=1 // pred_check
      _
    $region15: #{tpu_custom_call.1} parent=1 // pred_check_branch
      %34 = sbr.rel (0) target = $region17
    $region16: #{tpu_custom_call.1} parent=1 // pred_region
      %35 = dma.done [#allocation6], 64
    $region17: #{tpu_custom_call.1} parent=1 // pred_fallthru
      _
    %v36 = vld [vmem:[#allocation5] sm:$0xf]
    %v37 = vld [vmem:[#allocation2] sm:$0x3]
    %v39 = vlaneseq
    %v40 = vshrl.u32 %v39, 7
    %v41 = vsub.s32 0, %v40
    %v42 = vrot.slane %v37, %v41
    %v43 = vlaneseq
    %v44 = vshrl.u32 %v43, 7
    %v45 = vsub.s32 1, %v44
    %v46 = vrot.slane %v37, %v45
    %v47 = vcombine.low %v42, %v46
    %v49 = vunpack.c.l.s4 1983009808
    %v50 = vunpack.c.0.s8 %v49
    %v51 = vlaneseq
    %v52 = vshrl.u32 %v51, 7
    %v53 = vsub.s32 %v50, %v52
    %v54 = vrot.slane %v47, %v53
    %v56 = vmul.f32 %v36, %v54
    %57 = vst [vmem:[#allocation7] sm:$0xf] %v56
    // Predicated region
    $region18: #{tpu_custom_call.1} parent=1 // pred_check
      _
    $region19: #{tpu_custom_call.1} parent=1 // pred_check_branch
      %59 = sbr.rel (0) target = $region21
    $region20: #{tpu_custom_call.1} parent=1 // pred_region
      %s61 = ssub.s32 64, 64
      %62 = vsyncadd [#allocation4], %s61
      %s64 = sshll.u32 [#allocation7], 4
      %s65 = int_to_ptr.vmem [resolvable:$true] %s64
      %67 = dma.vmem_to_hbm [thread:$0]  %s65, 64, %s2, [#allocation4]
    $region21: #{tpu_custom_call.1} parent=1 // pred_fallthru
      _
    // Predicated region
    $region22: #{tpu_custom_call.1} parent=1 // pred_check
      _
    $region23: #{tpu_custom_call.1} parent=1 // pred_check_branch
      %69 = sbr.rel (0) target = $region25
    $region24: #{tpu_custom_call.1} parent=1 // pred_region
      %70 = dma.done [#allocation4], 64
    $region25: #{tpu_custom_call.1} parent=1 // pred_fallthru
      _
    %71 = vsyncpa [#allocation3], 1
    %72 = vsyncpa [#allocation6], 1
    %73 = vsyncpa [#allocation4], 1

</llo_original>
